<compile_context>
chip_gen: v7x
topology: tpu7x:2x2x1
jax: 0.10.0
libtpu: 0.0.40
codegen_flags: <defaults>
</compile_context>

<pallas_src>
import functools
import math

import jax
import jax.numpy as jnp
from jax.experimental import pallas as pl
from jax.experimental.pallas import tpu as pltpu


def _round_up(x, m):
    return -(-x // m) * m


def _round_down(x, m):
    return (x // m) * m


def _cdiv(a, b):
    return -(-a // b)


def _choose_fold(rows, n, max_lanes=512):
    """Largest k with k | rows and k*n <= max_lanes maximizing lane utilisation."""
    best_k, best_util = 1, n / _round_up(n, 128)
    for k in range(2, max(1, max_lanes // n) + 1):
        if rows % k:
            continue
        util = (k * n) / _round_up(k * n, 128)
        if util > best_util + 1e-12 or (abs(util - best_util) <= 1e-12 and k > best_k):
            best_k, best_util = k, util
    return best_k


def _num_tensorcores():
    """Best-effort TensorCore-per-chip count (v7x: 2, v5e/v6e: 1)."""
    try:
        info = pltpu.get_tpu_info()
        for name in ("num_tensorcores", "tensorcore_count", "num_cores",
                     "core_count", "cores_per_chip"):
            v = getattr(info, name, None)
            if isinstance(v, int) and v >= 1:
                return min(v, 8)
    except Exception:
        pass
    # Safe default: a 2-way outer split is ~free on 1-TC chips and is what
    # v7x needs to engage both TensorCores.
    return 2


def _partial_sum_kernel(x_ref, o_ref, *, tm, rows_folded, need_mask):
    """Accumulate per-column partial sums into a resident (8, n_eff) f32 block.

    x_ref: (tm, n_eff) tile of the lane-folded state.
    o_ref: (8, n_eff) partial sum for this core (resident across the inner
           'arbitrary' reduction axis).
    """
    s = pl.program_id(1)

    @pl.when(s == 0)
    def _init():
        o_ref[...] = jnp.zeros_like(o_ref)

    xf = x_ref[...].astype(jnp.float32)            # (tm, n_eff), tm % 8 == 0
    n_eff = xf.shape[1]

    if need_mask:
        # Logical (unclamped) row offset of this tile.  Rows past the real
        # data (ragged tail tiles and clamped duplicate tiles) are zeroed;
        # Pallas does NOT zero out-of-bounds input-block padding.
        start = (pl.program_id(0) * pl.num_programs(1) + s) * tm
        row_ids = start + jax.lax.broadcasted_iota(jnp.int32, (tm, n_eff), 0)
        xf = jnp.where(row_ids < rows_folded, xf, jnp.float32(0.0))

    # Sublane-preserving reshape -> reduction over the leading axis is pure
    # VPU vreg adds; the final 8 -> 1 sublane reduce happens once in the
    # wrapper (O(N), outside the hot loop).
    o_ref[...] += jnp.sum(xf.reshape(tm // 8, 8, n_eff), axis=0)


@functools.partial(jax.jit, static_argnames=("metric", "block_bytes"))
def firing_rate_loss(state, metric="l2", block_bytes=8 * 1024 * 1024):
    """state: (T, B, N[, ...]) array. Returns scalar f32 loss matching PyTorch."""
    assert metric in ("l1", "l2"), "metric must be either l1 or l2"
    if state.ndim < 2:
        raise ValueError("state must have at least (time, batch, ...) dims")
    T, B = state.shape[0], state.shape[1]
    N = math.prod(state.shape[2:])                 # flatten trailing unit dims
    rows = T * B
    if rows == 0 or N == 0:
        raise ValueError("firing_rate_loss: empty state (T*B == 0 or N == 0)")

    x2d = state.reshape(rows, N)                   # free row-major bitcast
    itemsize = jnp.dtype(state.dtype).itemsize
    align = {4: 8, 2: 16, 1: 32}.get(itemsize, 8)  # sublane packing per dtype

    # Lane folding: stack k consecutive rows into the 128-lane dim.  k divides
    # rows, so this reshape is free (no pad / slice copy of the big input).
    k = _choose_fold(rows, N)
    n_eff = k * N
    rows_folded = rows // k
    x_folded = x2d.reshape(rows_folded, n_eff)

    # Tiny-input safety: keep block row dim <= array row dim by zero-padding
    # the folded array up to one sublane group (touches < align rows only).
    if rows_folded < align:
        x_folded = jnp.pad(x_folded, ((0, align - rows_folded), (0, 0)))
        rows_folded = align                        # zero rows don't change sums

    lane_padded = _round_up(n_eff, 128)            # what Mosaic actually allocates

    # Row-tile size from the lane-padded footprint (Pallas double-buffers it).
    tm = _round_down(max(align, block_bytes // (lane_padded * itemsize)), align)
    tm = max(align, min(tm, _round_down(rows_folded, align)))
    # TODO(synk): extremely wide hidden dims (align*lane_padded*itemsize > the
    # block budget) would additionally need a lane-tiling grid axis.

    num_blocks = _cdiv(rows_folded, tm)
    P = max(1, min(_num_tensorcores(), num_blocks))    # leading 'parallel' axis
    S = _cdiv(num_blocks, P)                            # reduction steps / core
    # Shrink tm to minimise the masked tail while keeping the same grid shape.
    tm = max(align, min(tm, _round_up(_cdiv(rows_folded, P * S), align)))
    num_blocks = _cdiv(rows_folded, tm)
    need_mask = (rows_folded % tm != 0) or (P * S != num_blocks)
    last_block = num_blocks - 1

    kernel = functools.partial(_partial_sum_kernel, tm=tm,
                               rows_folded=rows_folded, need_mask=need_mask)

    partial = pl.pallas_call(
        kernel,
        out_shape=jax.ShapeDtypeStruct((P * 8, n_eff), jnp.float32),
        grid_spec=pltpu.PrefetchScalarGridSpec(
            num_scalar_prefetch=0,
            grid=(P, S),
            # Clamp the block index so the DMA never targets a fully
            # out-of-range block; clamped duplicates are masked in-kernel.
            in_specs=[pl.BlockSpec(
                (tm, n_eff),
                lambda p, s: (jnp.minimum(p * S + s, last_block), 0))],
            out_specs=pl.BlockSpec((8, n_eff), lambda p, s: (p, 0)),
        ),
        compiler_params=pltpu.CompilerParams(
            # TODO(synk): on v7x verify via xprof that 'parallel' shards rows
            # across both TensorCores; if not, switch to pltpu.CORE_PARALLEL.
            dimension_semantics=("parallel", "arbitrary"),
            vmem_limit_bytes=48 * 1024 * 1024,
        ),
        cost_estimate=pl.CostEstimate(
            flops=2 * rows_folded * n_eff,
            transcendentals=0,
            bytes_accessed=rows * N * itemsize + P * 8 * lane_padded * 4,
        ),
    )(x_folded)

    # O(N) finalize in plain JAX: collapse sublane/core partials, un-fold the
    # lanes, divide by the true T*B, then l1 / l2 over the N units.
    col_sum = jnp.sum(partial, axis=0)                         # (n_eff,)
    mean_fr = jnp.sum(col_sum.reshape(k, N), axis=0) / float(rows)
    if metric == "l1":
        return jnp.mean(jnp.abs(mean_fr))
    return jnp.mean(jnp.square(mean_fr))


def firing_rate_loss_ref(state, metric="l2"):
    mean_fr = jnp.mean(state.astype(jnp.float32), axis=(0, 1))
    if metric == "l1":
        return jnp.mean(jnp.abs(mean_fr))
    return jnp.mean(jnp.square(mean_fr))


if __name__ == "__main__":
    key = jax.random.PRNGKey(0)
    ok = True
    # (shape, dtype, block_bytes or None for default)
    cases = [
        ((8, 2, 32), jnp.float32, None),        # narrow hidden -> dense lane fold
        ((10, 3, 48), jnp.float32, None),       # non-pow2 hidden, odd-ish rows
        ((16, 4, 64), jnp.bfloat16, None),      # bf16 streaming path
        ((17, 4, 32), jnp.float32, 4096),       # forced multi-block: masking + clamp
        ((64, 16, 48), jnp.float32, 16384),     # forced multi-step reduction, P split
    ]
    for shape, dtype, bb in cases:
        key, sub = jax.random.split(key)
        state = jax.random.normal(sub, shape, dtype=jnp.float32).astype(dtype)
        for metric in ("l2", "l1"):
            if bb is None:
                got = firing_rate_loss(state, metric=metric)
            else:
                got = firing_rate_loss(state, metric=metric, block_bytes=bb)
            got = jax.block_until_ready(got)
            want = jax.block_until_ready(firing_rate_loss_ref(state, metric=metric))
            if not jnp.allclose(got, want, rtol=1e-4, atol=1e-6):
                ok = False
                print(f"MISMATCH shape={shape} dtype={dtype} metric={metric} "
                      f"block_bytes={bb}: got={got} want={want}")
    if ok:
        print("KERNEL_OK")
</pallas_src>

<mosaic_0001>
module attributes {stable_mosaic.version = 11 : i64} {
  func.func @_partial_sum_kernel(%arg0: i32, %arg1: i32, %arg2: memref<8x512xf32, #tpu.memory_space<vmem>>, %arg3: memref<8x512xf32, #tpu.memory_space<vmem>>) attributes {dimension_semantics = [#tpu.dimension_semantics<parallel>, #tpu.dimension_semantics<arbitrary>], iteration_bounds = array<i64: 1, 1>, scalar_prefetch = 0 : i64, scratch_operands = 0 : i64, tpu.core_type = #tpu.core_type<tc>, window_params = [{transform_indices = @transform_0, window_bounds = array<i64: 8, 512>}, {transform_indices = @transform_1, window_bounds = array<i64: 8, 512>}]} {
    %c0_i32 = arith.constant 0 : i32
    %0 = arith.cmpi eq, %arg1, %c0_i32 : i32
    %1 = arith.extui %0 : i1 to i32
    %c0_i32_0 = arith.constant 0 : i32
    %2 = arith.cmpi ne, %1, %c0_i32_0 : i32
    scf.if %2 {
      %cst_6 = arith.constant 0.000000e+00 : f32
      %9 = vector.broadcast %cst_6 : f32 to vector<8x512xf32>
      %c0_7 = arith.constant 0 : index
      %c0_8 = arith.constant 0 : index
      %10 = vector.load %arg3[%c0_7, %c0_8] : memref<8x512xf32, #tpu.memory_space<vmem>>, vector<8x512xf32>
      tpu.vector_store %arg3[%c0_7, %c0_8], %9 {strides = array<i32>} : memref<8x512xf32, #tpu.memory_space<vmem>>, vector<8x512xf32>,
    } else {
    }
    %c0 = arith.constant 0 : index
    %c0_1 = arith.constant 0 : index
    %3 = vector.load %arg2[%c0, %c0_1] : memref<8x512xf32, #tpu.memory_space<vmem>>, vector<8x512xf32>
    %c0_2 = arith.constant 0 : index
    %c0_3 = arith.constant 0 : index
    %4 = vector.load %arg3[%c0_2, %c0_3] : memref<8x512xf32, #tpu.memory_space<vmem>>, vector<8x512xf32>
    %5 = vector.shape_cast %3 : vector<8x512xf32> to vector<1x8x512xf32>
    %cst = arith.constant dense<0.000000e+00> : vector<8x512xf32>
    %6 = vector.multi_reduction <add>, %5, %cst [0] : vector<1x8x512xf32> to vector<8x512xf32>
    %7 = arith.addf %4, %6 : vector<8x512xf32>
    %c0_4 = arith.constant 0 : index
    %c0_5 = arith.constant 0 : index
    %8 = vector.load %arg3[%c0_4, %c0_5] : memref<8x512xf32, #tpu.memory_space<vmem>>, vector<8x512xf32>
    tpu.vector_store %arg3[%c0_4, %c0_5], %7 {strides = array<i32>} : memref<8x512xf32, #tpu.memory_space<vmem>>, vector<8x512xf32>,
    return
  }
  func.func @transform_0(%arg0: i32, %arg1: i32) -> (i32, i32) {
    %c1_i32 = arith.constant 1 : i32
    %0 = arith.muli %arg0, %c1_i32 : i32
    %1 = arith.addi %0, %arg1 : i32
    %c0_i32 = arith.constant 0 : i32
    %2 = arith.minsi %1, %c0_i32 : i32
    %c0_i32_0 = arith.constant 0 : i32
    %c0_i32_1 = arith.constant 0 : i32
    return %2, %c0_i32_0 : i32, i32
  }
  func.func @transform_1(%arg0: i32, %arg1: i32) -> (i32, i32) {
    %c0_i32 = arith.constant 0 : i32
    %c0_i32_0 = arith.constant 0 : i32
    return %arg0, %c0_i32 : i32, i32
  }
}

</mosaic_0001>

<llo_original>
// kernel: firing_rate_loss.1
$region0: #{firing_rate_loss.1}
  #allocation0 [shape = 'u32[]', space=smem, size = 0x4, offset = 0x4, fixed_abs, tag = 'smem constant byte address 0x4 - core index']
  #allocation1 [shape = 'u32[144,128]{1,0:T(1,128)}', space=vmem, size = 0x12000, scoped, tag = 'internal scratch']
  %s0 = inlined_call_operand.vmem [shape: f32[8,512], index: 0, kind: input, shape index: {}]
  %s1 = inlined_call_operand.vmem [shape: f32[8,512], index: 1, kind: output, shape index: {}]
  %s2 = sld [smem:[#allocation0]]
  $region18: #{firing_rate_loss.1} parent=0
    _
  %s4 = ssub.s32 1, %s2
  %s5 = scalar_select 0, %s4, %s2
  // Predicated region
  $region2: #{firing_rate_loss.1} parent=0 // pred_check
    _
  $region3: #{firing_rate_loss.1} parent=0 // pred_check_branch
    %7 = sbr.rel (0) target = $region5
  $region4: #{firing_rate_loss.1} parent=0 // pred_region
    %s8 = sadd.s32 0, 0
    %p9 = scmp.lt.s32.totalorder %s8, 0
    %s10 = scalar_select %p9, %s8, 0
    %p11 = scmp.lt.s32.totalorder %s10, 0
    %s12 = scalar_select %p11, %s10, 0
    %s13 = smul.addr %s12, 4
    %s14 = smul.addr %s13, 8
    %s15 = scalar_lea.vmem %s0, %s14
    %s16 = sadd.s32 0, 0
    %p17 = scmp.lt.s32.totalorder %s16, 0
    %s18 = scalar_select %p17, %s16, 0
  $region5: #{firing_rate_loss.1} parent=0 // pred_fallthru
    _
  %s19 = sadd.s32 0, 0
  %p20 = scmp.lt.s32.totalorder %s19, 0
  %s21 = scalar_select %p20, %s19, 0
  %p22 = scmp.lt.s32.totalorder %s21, 0
  %s23 = scalar_select %p22, %s21, 0
  %s24 = smul.addr %s23, 4
  %s25 = smul.addr %s24, 8
  %s26 = scalar_lea.vmem %s0, %s25
  %s27 = sadd.s32 0, 0
  %p28 = scmp.lt.s32.totalorder %s27, 0
  %s29 = scalar_select %p28, %s27, 0
  %p30 = scmp.lt.s32.totalorder %s29, 0
  %s31 = scalar_select %p30, %s29, 0
  %s32 = smul.addr %s31, 4
  %s33 = smul.addr %s32, 8
  %s34 = scalar_lea.vmem %s0, %s33
  %s35 = sadd.s32 0, 0
  %p36 = scmp.lt.s32.totalorder %s35, 0
  %s37 = scalar_select %p36, %s35, 0
  %p38 = scmp.eq.s32.totalorder 0, 0
  // Predicated region
  $region6: #{firing_rate_loss.1} parent=0 // pred_check
    %p39 = pneg %p38
  $region7: #{firing_rate_loss.1} parent=0 // pred_check_branch
    %41 = sbr.rel (%p39) target = $region9
  $region8: #{firing_rate_loss.1} parent=0 // pred_region
    %42 = vst [vmem:[%s1] sm:$0xff] 0.0
    %43 = vst [vmem:[%s1 + $0x8] sm:$0xff] 0.0
    %44 = vst [vmem:[%s1 + $0x10] sm:$0xff] 0.0
    %45 = vst [vmem:[%s1 + $0x18] sm:$0xff] 0.0
  $region9: #{firing_rate_loss.1} parent=0 // pred_fallthru
    _
  %v46 = vld [vmem:[%s34] sm:$0xff]
  %v47 = vld [vmem:[%s34 + $0x8] sm:$0xff]
  %v48 = vld [vmem:[%s34 + $0x10] sm:$0xff]
  %v49 = vld [vmem:[%s34 + $0x18] sm:$0xff]
  %v50 = vld [vmem:[%s1] sm:$0xff]
  %v51 = vld [vmem:[%s1 + $0x8] sm:$0xff]
  %v52 = vld [vmem:[%s1 + $0x10] sm:$0xff]
  %v53 = vld [vmem:[%s1 + $0x18] sm:$0xff]
  %v54 = vadd.f32 %v46, 0.0
  %v55 = vadd.f32 %v47, 0.0
  %v56 = vadd.f32 %v48, 0.0
  %v57 = vadd.f32 %v49, 0.0
  %v58 = vadd.f32 %v50, %v54
  %v59 = vadd.f32 %v51, %v55
  %v60 = vadd.f32 %v52, %v56
  %v61 = vadd.f32 %v53, %v57
  %62 = vst [vmem:[%s1] sm:$0xff] %v58
  %63 = vst [vmem:[%s1 + $0x8] sm:$0xff] %v59
  %64 = vst [vmem:[%s1 + $0x10] sm:$0xff] %v60
  %65 = vst [vmem:[%s1 + $0x18] sm:$0xff] %v61
  // Predicated region
  $region10: #{firing_rate_loss.1} parent=0 // pred_check
    _
  $region11: #{firing_rate_loss.1} parent=0 // pred_check_branch
    %67 = sbr.rel (0) target = $region13
  $region12: #{firing_rate_loss.1} parent=0 // pred_region
    _
  $region13: #{firing_rate_loss.1} parent=0 // pred_fallthru
    _
  // Predicated region
  $region14: #{firing_rate_loss.1} parent=0 // pred_check
    _
  $region15: #{firing_rate_loss.1} parent=0 // pred_check_branch
    %69 = sbr.rel (0) target = $region17
  $region16: #{firing_rate_loss.1} parent=0 // pred_region
    _
  $region17: #{firing_rate_loss.1} parent=0 // pred_fallthru
    _

</llo_original>
